<compile_context>
chip_gen: v6e
topology: v6e:2x2x1
jax: 0.10.0
libtpu: 0.0.40
codegen_flags: <defaults>
</compile_context>

<pallas_src>
import jax
import jax.numpy as jnp
import numpy as np
from jax.experimental import pallas as pl
from jax.experimental.pallas import tpu as pltpu

LN_EPS = 1e-5  # torch.nn.LayerNorm default eps (cancels from the forward; used in the ref)


def _vmem_limit_bytes():
    """Explicit scoped-VMEM limit: ~75% of physical capacity, capped at 100 MiB."""
    cap = 128 * 1024 * 1024
    try:
        cap = int(getattr(pltpu.get_tpu_info(), "vmem_capacity_bytes", cap))
    except Exception:
        pass
    return int(min(cap * 3 // 4, 100 * 1024 * 1024))


def _pack_factor(E):
    """Rows packed per block row so the kernel's minor dim is a lane-dense >=128 multiple."""
    if E % 128 == 0:
        return 1                  # already lane dense
    if 128 % E == 0:
        return 128 // E           # pack to exactly 128 lanes
    return 1                      # minor dim == full array dim (legal; masked stores)


def _choose_tile_rows(n_rows, row_bytes, weight_bytes, vmem_limit):
    """Largest row tile whose double-buffered in+out blocks (plus weights) fit VMEM."""
    budget = max(vmem_limit - 2 * weight_bytes - (4 << 20), 4 << 20)
    per_row = 2 * 2 * row_bytes              # (vals + out) blocks, double-buffered
    cap = max(8, budget // per_row)
    target = max(8, (4 << 20) // row_bytes)  # ~4 MiB blocks amortize per-step overhead
    tile = min(cap, target)
    if tile >= n_rows:
        return n_rows
    return max(8, (tile // 8) * 8)           # sublane-aligned; last tile may be partial


def _fused_gemm_kernel(vals_ref, w_ref, out_ref):
    # One MXU GEMM per row tile: bf16 operands, f32 accumulation, f32 store.
    out_ref[...] = jnp.dot(
        vals_ref[...].astype(jnp.bfloat16), w_ref[...],
        preferred_element_type=jnp.float32).astype(out_ref.dtype)


def relative_position_attention(pos, vals, w_q, w_k, w_v, w_proj, gamma, beta, num_heads):
    """Drop-in forward.  pos/vals: (B,T,E); w_q/w_k/w_v: (EH,E); w_proj: (E,EH); gamma/beta: (E,).

    Because softmax over the key axis sums to exactly 1, pos / Q / K / LayerNorm
    (gamma, beta) cancel from the forward; only the fused V -> project path remains.
    """
    B, T, E = pos.shape
    H = num_heads
    EH = E * H
    del pos, w_q, w_k, gamma, beta  # cancel exactly (see docstring)

    # Fold the torch chunk/stack/flatten head interleave (c = h*E+d -> d*H+h) into Wp^T
    # rows, then fuse the V projection and the output projection into one (E, E) matrix.
    c = np.arange(EH)
    perm = jnp.asarray((c % E) * H + (c // E))
    w_fused = (w_v.T @ w_proj.T[perm, :]).astype(jnp.float32)          # (E, E)

    # Lane-dense packing: k consecutive rows per block row vs. kron(I_k, W_fused).
    k = _pack_factor(E)
    if k > 1:
        w_block = jnp.kron(jnp.eye(k, dtype=jnp.float32), w_fused)     # (kE, kE) block-diag
    else:
        w_block = w_fused
    w_block = w_block.astype(jnp.bfloat16)
    C = k * E

    rows = vals.reshape(B * T, E)
    pad = (-(B * T)) % k
    if pad:
        rows = jnp.concatenate([rows, jnp.zeros((pad, E), rows.dtype)], axis=0)
    vals2d = rows.reshape(-1, C)                                        # (R, C)
    R = vals2d.shape[0]

    vmem_limit = _vmem_limit_bytes()
    weight_bytes = C * C * 2
    tile_r = _choose_tile_rows(R, C * 4, weight_bytes, vmem_limit)
    grid = (pl.cdiv(R, tile_r),)

    out2d = pl.pallas_call(
        _fused_gemm_kernel,
        out_shape=jax.ShapeDtypeStruct((R, C), jnp.float32),
        grid=grid,
        in_specs=[
            pl.BlockSpec((tile_r, C), lambda r: (r, 0)),
            # Constant block index -> DMA'd once; the (C,C) bf16 fused weight is tiny, so
            # the default double-buffering costs negligible VMEM.
            pl.BlockSpec((C, C), lambda r: (0, 0)),
        ],
        out_specs=pl.BlockSpec((tile_r, C), lambda r: (r, 0)),
        compiler_params=pltpu.CompilerParams(
            dimension_semantics=("parallel",),   # batch folded into rows: both v7x TCs busy
            vmem_limit_bytes=vmem_limit,
        ),
    )(vals2d, w_block)

    return out2d.reshape(-1, E)[:B * T].reshape(B, T, E)


def ref_forward(pos, vals, w_q, w_k, w_v, w_proj, gamma, beta, H):
    """Pure-JAX f32 transliteration of the PyTorch forward (verification only)."""
    E = pos.shape[-1]
    mean = pos.mean(-1, keepdims=True)
    var = ((pos - mean) ** 2).mean(-1, keepdims=True)
    pe = (pos - mean) / jnp.sqrt(var + LN_EPS) * gamma + beta
    Q = pe @ w_q.T
    K = pe @ w_k.T
    V = vals @ w_v.T
    W = Q[..., :, None, :] - K[..., None, :, :]            # (B, T, T, EH)
    W = jnp.stack(jnp.split(W, H, axis=-1), axis=-1)       # (B, T, T, E, H)
    W = jax.nn.softmax(W, axis=-3)
    Vh = jnp.stack(jnp.split(V, H, axis=-1), axis=-1)      # (B, T, E, H)
    out = jnp.einsum('btdh,btwdh->btdh', Vh, W)
    out = out.reshape(out.shape[:-2] + (E * H,))
    return out @ w_proj.T


def _run_case(B, T, E, H, seed):
    key = jax.random.PRNGKey(seed)
    ks = jax.random.split(key, 8)
    pos = jax.random.normal(ks[0], (B, T, E), jnp.float32)
    vals = jax.random.normal(ks[1], (B, T, E), jnp.float32)

    s_in = 1.0 / np.sqrt(E)
    s_pr = 1.0 / np.sqrt(E * H)
    w_q = jax.random.uniform(ks[2], (E * H, E), jnp.float32, -s_in, s_in)
    w_k = jax.random.uniform(ks[3], (E * H, E), jnp.float32, -s_in, s_in)
    w_v = jax.random.uniform(ks[4], (E * H, E), jnp.float32, -s_in, s_in)
    w_p = jax.random.uniform(ks[5], (E, E * H), jnp.float32, -s_pr, s_pr)
    gamma = jax.random.normal(ks[6], (E,), jnp.float32)   # non-default affine: must still cancel
    beta = jax.random.normal(ks[7], (E,), jnp.float32)

    out = relative_position_attention(pos, vals, w_q, w_k, w_v, w_p, gamma, beta, H)
    out = jax.block_until_ready(out)
    ref = ref_forward(pos, vals, w_q, w_k, w_v, w_p, gamma, beta, H)
    assert out.shape == (B, T, E)
    # bf16 MXU operands (f32 accumulation) vs. the all-f32 reference -> loosened tolerance.
    np.testing.assert_allclose(np.asarray(out), np.asarray(ref), rtol=3e-2, atol=3e-2)


if __name__ == "__main__":
    _run_case(B=2, T=8, E=32, H=2, seed=0)    # lane-dense packed path (k=4, minor dim 128)
    _run_case(B=1, T=10, E=32, H=3, seed=1)   # padded row count + asymmetric E/H interleave
    print("KERNEL_OK")
</pallas_src>

<mosaic_0001>
module attributes {stable_mosaic.version = 11 : i64} {
  func.func @_fused_gemm_kernel(%arg0: i32, %arg1: memref<4x128xf32, #tpu.memory_space<vmem>>, %arg2: memref<128x128xbf16, #tpu.memory_space<vmem>>, %arg3: memref<4x128xf32, #tpu.memory_space<vmem>>) attributes {dimension_semantics = [#tpu.dimension_semantics<parallel>], iteration_bounds = array<i64: 1>, scalar_prefetch = 0 : i64, scratch_operands = 0 : i64, tpu.core_type = #tpu.core_type<tc>, window_params = [{transform_indices = @transform_0, window_bounds = array<i64: 4, 128>}, {pipeline_mode = #tpu.pipeline_mode<synchronous>, transform_indices = @transform_1, window_bounds = array<i64: 128, 128>}, {transform_indices = @transform_2, window_bounds = array<i64: 4, 128>}]} {
    %c0 = arith.constant 0 : index
    %c0_0 = arith.constant 0 : index
    %0 = vector.load %arg1[%c0, %c0_0] : memref<4x128xf32, #tpu.memory_space<vmem>>, vector<4x128xf32>
    %1 = arith.truncf %0 : vector<4x128xf32> to vector<4x128xbf16>
    %c0_1 = arith.constant 0 : index
    %c0_2 = arith.constant 0 : index
    %2 = vector.load %arg2[%c0_1, %c0_2] : memref<128x128xbf16, #tpu.memory_space<vmem>>, vector<128x128xbf16>
    %cst = arith.constant dense<0.000000e+00> : vector<4x128xf32>
    %3 = tpu.matmul %1, %2, %cst {dimension_numbers = #tpu.dot_dimension_numbers<[1], [0], [0], [1], [0, 0, 1, 1], [], []>} : vector<4x128xbf16>, vector<128x128xbf16>, vector<4x128xf32> -> vector<4x128xf32>
    %c0_3 = arith.constant 0 : index
    %c0_4 = arith.constant 0 : index
    %4 = vector.load %arg3[%c0_3, %c0_4] : memref<4x128xf32, #tpu.memory_space<vmem>>, vector<4x128xf32>
    tpu.vector_store %arg3[%c0_3, %c0_4], %3 {strides = array<i32>} : memref<4x128xf32, #tpu.memory_space<vmem>>, vector<4x128xf32>,
    return
  }
  func.func @transform_0(%arg0: i32) -> (i32, i32) {
    %c0_i32 = arith.constant 0 : i32
    %c0_i32_0 = arith.constant 0 : i32
    return %arg0, %c0_i32 : i32, i32
  }
  func.func @transform_1(%arg0: i32) -> (i32, i32) {
    %c0_i32 = arith.constant 0 : i32
    %c0_i32_0 = arith.constant 0 : i32
    %c0_i32_1 = arith.constant 0 : i32
    return %c0_i32, %c0_i32_0 : i32, i32
  }
  func.func @transform_2(%arg0: i32) -> (i32, i32) {
    %c0_i32 = arith.constant 0 : i32
    %c0_i32_0 = arith.constant 0 : i32
    return %arg0, %c0_i32 : i32, i32
  }
}

</mosaic_0001>

<llo_original>
// kernel: tpu_custom_call.1
$region0: #{tpu_custom_call.1}
  #allocation0 [shape = 'u32[]', space=smem, size = 0x4, offset = 0x4, fixed_abs, tag = 'smem constant byte address 0x4 - core index']
  #allocation1 [shape = 'u32[144,128]{1,0:T(1,128)}', space=vmem, size = 0x12000, scoped, tag = 'internal scratch']
  %s0 = inlined_call_operand.hbm [shape: f32[4,128], index: 0, kind: input, shape index: {}]
  %s1 = inlined_call_operand.hbm [shape: bf16[128,128], index: 1, kind: input, shape index: {}]
  %s2 = inlined_call_operand.hbm [shape: f32[4,128], index: 2, kind: output, shape index: {}]
  %s3 = sld [smem:[#allocation0]]
  $region26: #{tpu_custom_call.1} parent=0
    _
  %s5 = ssub.s32 1, %s3
  %s6 = scalar_select 0, %s5, %s3
  $region1: #{tpu_custom_call.1} parent=0
    #allocation2 [shape = 'u8[2048]{0}', space=vmem, size = 0x800, scoped, tag = 'input window, operand 0, single buffered']
    #allocation3 [shape = 's32[1]{0}', space=sflag, size = 0x4, scoped, tag = 'scoped memory for tpu_custom_call.1']
    #allocation4 [shape = 's32[1]{0}', space=sflag, size = 0x4, scoped, tag = 'scoped memory for tpu_custom_call.1']
    #allocation5 [shape = 'u8[32768]{0}', space=vmem, size = 0x8000, scoped, tag = 'input window, operand 1, single buffered']
    #allocation6 [shape = 's32[1]{0}', space=sflag, size = 0x4, scoped, tag = 'scoped memory for tpu_custom_call.1']
    #allocation7 [shape = 'u8[2048]{0}', space=vmem, size = 0x800, scoped, tag = 'output window, operand 0, single buffered']
    %7 = vsyncpa [#allocation3], 0
    %8 = vsyncpa [#allocation6], 0
    %9 = vsyncpa [#allocation4], 0
    // Predicated region
    $region2: #{tpu_custom_call.1} parent=1 // pred_check
      _
    $region3: #{tpu_custom_call.1} parent=1 // pred_check_branch
      %11 = sbr.rel (0) target = $region5
    $region4: #{tpu_custom_call.1} parent=1 // pred_region
      %s13 = ssub.s32 64, 64
      %14 = vsyncadd [#allocation3], %s13
      %s16 = sshll.u32 [#allocation2], 4
      %s17 = int_to_ptr.vmem [resolvable:$true] %s16
      %19 = dma.hbm_to_vmem [thread:$0]  %s0, 64, %s17, [#allocation3]
    $region5: #{tpu_custom_call.1} parent=1 // pred_fallthru
      _
    // Predicated region
    $region6: #{tpu_custom_call.1} parent=1 // pred_check
      _
    $region7: #{tpu_custom_call.1} parent=1 // pred_check_branch
      %21 = sbr.rel (0) target = $region9
    $region8: #{tpu_custom_call.1} parent=1 // pred_region
      %s23 = ssub.s32 1024, 1024
      %24 = vsyncadd [#allocation6], %s23
      %s25 = sshll.u32 [#allocation5], 4
      %s26 = int_to_ptr.vmem [resolvable:$true] %s25
      %31 = dma.hbm_to_vmem [thread:$0]  %s1, 1024, %s26, [#allocation6], 64, 64, 4
    $region9: #{tpu_custom_call.1} parent=1 // pred_fallthru
      _
    // Predicated region
    $region10: #{tpu_custom_call.1} parent=1 // pred_check
      _
    $region11: #{tpu_custom_call.1} parent=1 // pred_check_branch
      %33 = sbr.rel (0) target = $region13
    $region12: #{tpu_custom_call.1} parent=1 // pred_region
      %34 = dma.done [#allocation3], 64
    $region13: #{tpu_custom_call.1} parent=1 // pred_fallthru
      _
    // Predicated region
    $region14: #{tpu_custom_call.1} parent=1 // pred_check
      _
    $region15: #{tpu_custom_call.1} parent=1 // pred_check_branch
      %36 = sbr.rel (0) target = $region17
    $region16: #{tpu_custom_call.1} parent=1 // pred_region
      %37 = dma.done [#allocation6], 1024
    $region17: #{tpu_custom_call.1} parent=1 // pred_fallthru
      _
    %v39 = vld [vmem:[#allocation2] sm:$0xf]
    %v40 = vpack.c.bf16 %v39, %v39
    %v41 = vld [vmem:[#allocation5] sm:$0xf]
    %v42 = vld [vmem:[#allocation5 + $0x4] sm:$0xf]
    %v43 = vld [vmem:[#allocation5 + $0x8] sm:$0xf]
    %v44 = vld [vmem:[#allocation5 + $0xc] sm:$0xf]
    %v45 = vld [vmem:[#allocation5 + $0x10] sm:$0xf]
    %v46 = vld [vmem:[#allocation5 + $0x14] sm:$0xf]
    %v47 = vld [vmem:[#allocation5 + $0x18] sm:$0xf]
    %v48 = vld [vmem:[#allocation5 + $0x1c] sm:$0xf]
    %v49 = vld [vmem:[#allocation5 + $0x20] sm:$0xf]
    %v50 = vld [vmem:[#allocation5 + $0x24] sm:$0xf]
    %v51 = vld [vmem:[#allocation5 + $0x28] sm:$0xf]
    %v52 = vld [vmem:[#allocation5 + $0x2c] sm:$0xf]
    %v53 = vld [vmem:[#allocation5 + $0x30] sm:$0xf]
    %v54 = vld [vmem:[#allocation5 + $0x34] sm:$0xf]
    %v55 = vld [vmem:[#allocation5 + $0x38] sm:$0xf]
    %v56 = vld [vmem:[#allocation5 + $0x3c] sm:$0xf]
    %v73 = vunpack.c.l.b16 %v41
    %v74 = vunpack.c.l.b16 %v42
    %v75 = vunpack.c.l.b16 %v43
    %v76 = vunpack.c.l.b16 %v44
    %v77 = vunpack.c.l.b16 %v45
    %v78 = vunpack.c.l.b16 %v46
    %v79 = vunpack.c.l.b16 %v47
    %v80 = vunpack.c.l.b16 %v48
    %v81 = vunpack.c.l.b16 %v49
    %v82 = vunpack.c.l.b16 %v50
    %v83 = vunpack.c.l.b16 %v51
    %v84 = vunpack.c.l.b16 %v52
    %v85 = vunpack.c.l.b16 %v53
    %v86 = vunpack.c.l.b16 %v54
    %v87 = vunpack.c.l.b16 %v55
    %v88 = vunpack.c.l.b16 %v56
    %v89 = vpack.c.b16 %v74, %v73
    %v90 = vpack.c.b16 %v76, %v75
    %v91 = vpack.c.b16 %v78, %v77
    %v92 = vpack.c.b16 %v80, %v79
    %v93 = vpack.c.b16 %v82, %v81
    %v94 = vpack.c.b16 %v84, %v83
    %v95 = vpack.c.b16 %v86, %v85
    %v96 = vpack.c.b16 %v88, %v87
    %105 = vmatprep.subr.bf16.mxu0 0
    %106 = vmatpush1.bf16.msra.mxu0 %v96
    %107 = vmatprep.subr.bf16.mxu0 0
    %108 = vmatpush1.bf16.msra.mxu0 %v95
    %109 = vmatprep.subr.bf16.mxu0 0
    %110 = vmatpush1.bf16.msra.mxu0 %v94
    %111 = vmatprep.subr.bf16.mxu0 0
    %112 = vmatpush1.bf16.msra.mxu0 %v93
    %113 = vmatprep.subr.bf16.mxu0 0
    %114 = vmatpush1.bf16.msra.mxu0 %v92
    %115 = vmatprep.subr.bf16.mxu0 0
    %116 = vmatpush1.bf16.msra.mxu0 %v91
    %117 = vmatprep.subr.bf16.mxu0 0
    %118 = vmatpush1.bf16.msra.mxu0 %v90
    %119 = vmatprep.subr.bf16.mxu0 0
    %120 = vmatpush1.bf16.msra.mxu0 %v89
    %121 = vmatprep.subr.bf16.mxu0 0
    %122 = vmatpush2.bf16.msra.mxu0 0
    %123 = vmatprep.subr.bf16.mxu0 0
    %124 = vmatpush2.bf16.msra.mxu0 0
    %125 = vmatprep.subr.bf16.mxu0 0
    %126 = vmatpush2.bf16.msra.mxu0 0
    %127 = vmatprep.subr.bf16.mxu0 0
    %128 = vmatpush2.bf16.msra.mxu0 0
    %129 = vmatprep.subr.bf16.mxu0 0
    %130 = vmatpush2.bf16.msra.mxu0 0
    %131 = vmatprep.subr.bf16.mxu0 0
    %132 = vmatpush2.bf16.msra.mxu0 0
    %133 = vmatprep.subr.bf16.mxu0 0
    %134 = vmatpush2.bf16.msra.mxu0 0
    %135 = vmatprep.subr.bf16.mxu0 0
    %136 = vmatpush2.bf16.msra.mxu0 0
    %137 = vmatprep.mubr.bf16.mxu0 0
    %138 = vmatmul.mubr.bf16.gmra.mxu0 %v40
    %v139 = vpop.f32.mrf.mxu0
    %v140 = vadd.f32 0.0, %v139
    %v141 = vpop.f32.mrf.mxu0
    %v142 = vpop.f32.mrf.mxu0
    %v143 = vpop.f32.mrf.mxu0
    %144 = vdwg.mxu0
    %145 = vst [vmem:[#allocation7] sm:$0xf] %v140
    // Predicated region
    $region18: #{tpu_custom_call.1} parent=1 // pred_check
      _
    $region19: #{tpu_custom_call.1} parent=1 // pred_check_branch
      %147 = sbr.rel (0) target = $region21
    $region20: #{tpu_custom_call.1} parent=1 // pred_region
      %s149 = ssub.s32 64, 64
      %150 = vsyncadd [#allocation4], %s149
      %s152 = sshll.u32 [#allocation7], 4
      %s153 = int_to_ptr.vmem [resolvable:$true] %s152
      %155 = dma.vmem_to_hbm [thread:$0]  %s153, 64, %s2, [#allocation4]
    $region21: #{tpu_custom_call.1} parent=1 // pred_fallthru
      _
    // Predicated region
    $region22: #{tpu_custom_call.1} parent=1 // pred_check
      _
    $region23: #{tpu_custom_call.1} parent=1 // pred_check_branch
      %157 = sbr.rel (0) target = $region25
    $region24: #{tpu_custom_call.1} parent=1 // pred_region
      %158 = dma.done [#allocation4], 64
    $region25: #{tpu_custom_call.1} parent=1 // pred_fallthru
      _
    %159 = vsyncpa [#allocation3], 1
    %160 = vsyncpa [#allocation6], 1
    %161 = vsyncpa [#allocation4], 1

</llo_original>
